<compile_context>
chip_gen: v5e
topology: v5e:2x2
jax: 0.10.0
libtpu: 0.0.40
codegen_flags: <defaults>
</compile_context>

<pallas_src>
import functools

import jax
import jax.numpy as jnp
from jax.experimental import pallas as pl
from jax.experimental.pallas import tpu as pltpu


def _cdiv(a: int, b: int) -> int:
    return -(-a // b)


def _round_up(a: int, b: int) -> int:
    return _cdiv(a, b) * b


def _ls_kernel(coef_ref, x_ref, tgt_ref, out_ref,
               m_sc, s_sc, t_sc, p_sc, *,
               n_true: int, c_true: int, has_class_tail: bool):
    # coef_ref: (1,2) f32 SMEM -> [w_target, w_all]
    # x_ref:    (TN,TC) native-dtype VMEM block of logits
    # tgt_ref:  (TN,1)  int32 VMEM block of targets
    # out_ref:  (8,128) f32 lane-dense per-row-tile partial loss sum
    # scratch:  four (TN,1) f32 running stats: max, exp-sum, x[target], sum(x)
    i = pl.program_id(0)
    j = pl.program_id(1)
    last_j = pl.num_programs(1) - 1

    @pl.when(j == 0)
    def _init():
        m_sc[...] = jnp.full_like(m_sc, -jnp.inf)
        s_sc[...] = jnp.zeros_like(s_sc)
        t_sc[...] = jnp.zeros_like(t_sc)
        p_sc[...] = jnp.zeros_like(p_sc)

    x = x_ref[...].astype(jnp.float32)        # native-dtype DMA, upcast here
    tn, tc = x.shape

    # Block-local iota (loop-invariant) compared against per-row local targets
    # and a scalar class bound -> no full (tn,tc) `j*tc + iota` tensor.
    iota = jax.lax.broadcasted_iota(jnp.int32, (tn, tc), 1)
    local_tgt = tgt_ref[...] - j * tc                         # (tn, 1)
    is_tgt = iota == local_tgt                                # (tn, tc)

    def _accum(col_ok):
        # Online logsumexp + running sums.  col_ok is None on the unmasked
        # fast path (all columns of this block are valid classes).
        m_old = m_sc[...]
        xmax = x if col_ok is None else jnp.where(col_ok, x, -jnp.inf)
        m_new = jnp.maximum(m_old, jnp.max(xmax, axis=1, keepdims=True))
        e = jnp.exp(x - m_new)
        if col_ok is not None:
            e = jnp.where(col_ok, e, 0.0)
        s_sc[...] = s_sc[...] * jnp.exp(m_old - m_new) + jnp.sum(
            e, axis=1, keepdims=True)
        m_sc[...] = m_new
        # Valid targets never point at padded columns, so no col mask needed.
        t_sc[...] += jnp.sum(jnp.where(is_tgt, x, 0.0), axis=1, keepdims=True)
        xsum = x if col_ok is None else jnp.where(col_ok, x, 0.0)
        p_sc[...] += jnp.sum(xsum, axis=1, keepdims=True)

    if has_class_tail:
        @pl.when(j == last_j)
        def _tail():
            _accum(iota < (c_true - j * tc))

        @pl.when(j != last_j)
        def _interior():
            _accum(None)
    else:
        _accum(None)

    @pl.when(j == last_j)
    def _finalize():
        w_tgt = coef_ref[0, 0]
        w_all = coef_ref[0, 1]
        lse = m_sc[...] + jnp.log(s_sc[...])                      # (TN,1)
        logp_tgt = t_sc[...] - lse
        sum_logp = p_sc[...] - jnp.float32(c_true) * lse
        per_row = -(w_tgt * logp_tgt + w_all * sum_logp)          # (TN,1)
        # Mask padded tail rows of this (possibly ragged) row tile.
        row_ids = i * tn + jax.lax.broadcasted_iota(jnp.int32, (tn, 1), 0)
        per_row = jnp.where(row_ids < n_true, per_row, 0.0)
        tile_sum = jnp.sum(per_row)
        out_ref[...] = jnp.broadcast_to(tile_sum, out_ref.shape).astype(
            jnp.float32)


def label_smoothing_loss(x, target, eps: float = 0.0, *,
                         tn: int = 256, tc: int | None = None):
    """Pallas TPU implementation of LabelSmoothingLoss.forward.

    x: (N, C) logits (float32 or bfloat16), target: (N,) integer class ids.
    Precondition (same as the PyTorch module): C >= 2 whenever eps != 0.
    Note: out-of-range targets (>= C) do not error (PyTorch would raise).
    """
    n, c = x.shape

    # Class tile default: ~4 MiB per DMA step in the native dtype.
    if tc is None:
        tc = 8192 if jnp.dtype(x.dtype).itemsize <= 2 else 4096

    # Row tile: multiple of 8, capped so the "parallel" batch axis has at
    # least two tiles when possible (keeps both v7x TensorCores busy).
    tn = _round_up(max(8, min(int(tn), _round_up(_cdiv(n, 2), 8))), 8)
    gn = _cdiv(n, tn)

    # Class tile: one full-width block if it fits, else 128-aligned tiles.
    # No wrapper-side padding of x; ragged edge blocks are masked in-kernel.
    if c <= tc:
        tc_eff = c
    else:
        tc_eff = _round_up(min(int(tc), c), 128)
    gc = _cdiv(c, tc_eff)
    has_class_tail = (c % tc_eff) != 0

    tgt = target.reshape(-1).astype(jnp.int32).reshape(n, 1)

    # Closed-form smoothing coefficients as a runtime SMEM input
    # (no recompile per eps value).
    w_all = eps / (c - 1) if c > 1 else 0.0
    w_tgt = 1.0 - eps - w_all
    coef = jnp.asarray([[w_tgt, w_all]], dtype=jnp.float32)

    kernel = functools.partial(_ls_kernel, n_true=n, c_true=c,
                               has_class_tail=has_class_tail)

    partials = pl.pallas_call(
        kernel,
        grid=(gn, gc),
        in_specs=[
            pl.BlockSpec(memory_space=pltpu.MemorySpace.SMEM),     # coef
            pl.BlockSpec((tn, tc_eff), lambda i, j: (i, j)),       # logits
            pl.BlockSpec((tn, 1), lambda i, j: (i, 0)),            # targets
        ],
        out_specs=pl.BlockSpec((8, 128), lambda i, j: (i, 0)),
        out_shape=jax.ShapeDtypeStruct((gn * 8, 128), jnp.float32),
        scratch_shapes=[pltpu.VMEM((tn, 1), jnp.float32)] * 4,
        compiler_params=pltpu.CompilerParams(
            dimension_semantics=("parallel", "arbitrary"),
            vmem_limit_bytes=64 * 1024 * 1024,
        ),
    )(coef, x, tgt)

    # tile_sum is broadcast over every element of each (8,128) output block,
    # so a plain sum (no strided gather) recovers 1024 * sum-of-tile-sums.
    return jnp.sum(partials) / (8.0 * 128.0 * n)


def _reference(x, target, eps):
    n, c = x.shape
    one_hot = jax.nn.one_hot(target, c, dtype=x.dtype)
    one_hot = one_hot * (1.0 - eps) + (1.0 - one_hot) * (eps / (c - 1))
    log_prb = jax.nn.log_softmax(x, axis=1)
    return -(one_hot * log_prb).sum(axis=1).mean()


if __name__ == "__main__":
    key = jax.random.PRNGKey(0)
    kx, kt = jax.random.split(key)
    EPS = 0.1

    # Case 1: multi-block grid on both axes (online-LSE path, no class tail).
    N1, C1 = 32, 256
    x1 = jax.random.normal(kx, (N1, C1), dtype=jnp.float32)
    t1 = jax.random.randint(kt, (N1,), 0, C1, dtype=jnp.int32)
    out1 = jax.block_until_ready(label_smoothing_loss(x1, t1, eps=EPS,
                                                      tn=8, tc=128))
    ref1 = _reference(x1, t1, EPS)
    assert jnp.allclose(out1, ref1, rtol=1e-4, atol=1e-4), (out1, ref1)

    # Case 2: ragged rows AND ragged class tail (tail-only masking path,
    # no wrapper-side padding anywhere).
    N2, C2 = 10, 200
    x2 = jax.random.normal(kx, (N2, C2), dtype=jnp.float32)
    t2 = jax.random.randint(kt, (N2,), 0, C2, dtype=jnp.int32)
    out2 = jax.block_until_ready(label_smoothing_loss(x2, t2, eps=EPS,
                                                      tn=8, tc=128))
    ref2 = _reference(x2, t2, EPS)
    assert jnp.allclose(out2, ref2, rtol=1e-4, atol=1e-4), (out2, ref2)

    # Case 3: native bf16 input, default tiles (single full-width class block,
    # two ragged row tiles, in-kernel upcast).
    N3, C3 = 24, 384
    x3 = jax.random.normal(kx, (N3, C3), dtype=jnp.bfloat16)
    t3 = jax.random.randint(kt, (N3,), 0, C3, dtype=jnp.int32)
    out3 = jax.block_until_ready(label_smoothing_loss(x3, t3, eps=EPS))
    ref3 = _reference(x3.astype(jnp.float32), t3, EPS)
    assert jnp.allclose(out3, ref3, rtol=1e-3, atol=1e-3), (out3, ref3)

    print("KERNEL_OK")
</pallas_src>

<mosaic_0001>
module attributes {stable_mosaic.version = 11 : i64} {
  func.func @_ls_kernel(%arg0: i32, %arg1: i32, %arg2: memref<1x2xf32, #tpu.memory_space<smem>>, %arg3: memref<8x128xf32, #tpu.memory_space<vmem>>, %arg4: memref<8x1xi32, #tpu.memory_space<vmem>>, %arg5: memref<8x128xf32, #tpu.memory_space<vmem>>, %arg6: memref<8x1xf32, #tpu.memory_space<vmem>>, %arg7: memref<8x1xf32, #tpu.memory_space<vmem>>, %arg8: memref<8x1xf32, #tpu.memory_space<vmem>>, %arg9: memref<8x1xf32, #tpu.memory_space<vmem>>) attributes {dimension_semantics = [#tpu.dimension_semantics<parallel>, #tpu.dimension_semantics<arbitrary>], iteration_bounds = array<i64: 4, 2>, scalar_prefetch = 0 : i64, scratch_operands = 4 : i64, tpu.core_type = #tpu.core_type<tc>, window_params = [{transform_indices = @transform_0, window_bounds = array<i64: 1, 2>}, {transform_indices = @transform_1, window_bounds = array<i64: 8, 128>}, {transform_indices = @transform_2, window_bounds = array<i64: 8, 1>}, {transform_indices = @transform_3, window_bounds = array<i64: 8, 128>}]} {
    %c0_i32 = arith.constant 0 : i32
    %0 = arith.cmpi eq, %arg1, %c0_i32 : i32
    %1 = arith.extui %0 : i1 to i32
    %c0_i32_0 = arith.constant 0 : i32
    %2 = arith.cmpi ne, %1, %c0_i32_0 : i32
    scf.if %2 {
      %cst_25 = arith.constant 0xFF800000 : f32
      %42 = vector.broadcast %cst_25 : f32 to vector<8x1xf32>
      %c0_26 = arith.constant 0 : index
      %c0_27 = arith.constant 0 : index
      %43 = vector.load %arg6[%c0_26, %c0_27] : memref<8x1xf32, #tpu.memory_space<vmem>>, vector<8x1xf32>
      tpu.vector_store %arg6[%c0_26, %c0_27], %42 {strides = array<i32>} : memref<8x1xf32, #tpu.memory_space<vmem>>, vector<8x1xf32>,
      %cst_28 = arith.constant 0.000000e+00 : f32
      %44 = vector.broadcast %cst_28 : f32 to vector<8x1xf32>
      %c0_29 = arith.constant 0 : index
      %c0_30 = arith.constant 0 : index
      %45 = vector.load %arg7[%c0_29, %c0_30] : memref<8x1xf32, #tpu.memory_space<vmem>>, vector<8x1xf32>
      tpu.vector_store %arg7[%c0_29, %c0_30], %44 {strides = array<i32>} : memref<8x1xf32, #tpu.memory_space<vmem>>, vector<8x1xf32>,
      %cst_31 = arith.constant 0.000000e+00 : f32
      %46 = vector.broadcast %cst_31 : f32 to vector<8x1xf32>
      %c0_32 = arith.constant 0 : index
      %c0_33 = arith.constant 0 : index
      %47 = vector.load %arg8[%c0_32, %c0_33] : memref<8x1xf32, #tpu.memory_space<vmem>>, vector<8x1xf32>
      tpu.vector_store %arg8[%c0_32, %c0_33], %46 {strides = array<i32>} : memref<8x1xf32, #tpu.memory_space<vmem>>, vector<8x1xf32>,
      %cst_34 = arith.constant 0.000000e+00 : f32
      %48 = vector.broadcast %cst_34 : f32 to vector<8x1xf32>
      %c0_35 = arith.constant 0 : index
      %c0_36 = arith.constant 0 : index
      %49 = vector.load %arg9[%c0_35, %c0_36] : memref<8x1xf32, #tpu.memory_space<vmem>>, vector<8x1xf32>
      tpu.vector_store %arg9[%c0_35, %c0_36], %48 {strides = array<i32>} : memref<8x1xf32, #tpu.memory_space<vmem>>, vector<8x1xf32>,
    } else {
    }
    %c0 = arith.constant 0 : index
    %c0_1 = arith.constant 0 : index
    %3 = vector.load %arg3[%c0, %c0_1] : memref<8x128xf32, #tpu.memory_space<vmem>>, vector<8x128xf32>
    %4 = tpu.iota {dimensions = array<i32: 1>} : vector<8x128xi32>
    %c0_2 = arith.constant 0 : index
    %c0_3 = arith.constant 0 : index
    %5 = vector.load %arg4[%c0_2, %c0_3] : memref<8x1xi32, #tpu.memory_space<vmem>>, vector<8x1xi32>
    %c128_i32 = arith.constant 128 : i32
    %6 = arith.muli %arg1, %c128_i32 : i32
    %7 = vector.broadcast %6 : i32 to vector<8x1xi32>
    %8 = arith.subi %5, %7 : vector<8x1xi32>
    %9 = vector.broadcast %8 : vector<8x1xi32> to vector<8x128xi32>
    %10 = arith.cmpi eq, %4, %9 : vector<8x128xi32>
    %c0_4 = arith.constant 0 : index
    %c0_5 = arith.constant 0 : index
    %11 = vector.load %arg6[%c0_4, %c0_5] : memref<8x1xf32, #tpu.memory_space<vmem>>, vector<8x1xf32>
    %cst = arith.constant dense<0xFF800000> : vector<8xf32>
    %12 = vector.multi_reduction <maximumf>, %3, %cst [1] : vector<8x128xf32> to vector<8xf32>
    %13 = vector.shape_cast %12 : vector<8xf32> to vector<8x1xf32>
    %14 = arith.maximumf %11, %13 : vector<8x1xf32>
    %15 = vector.broadcast %14 : vector<8x1xf32> to vector<8x128xf32>
    %16 = arith.subf %3, %15 : vector<8x128xf32>
    %17 = math.exp %16 : vector<8x128xf32>
    %c0_6 = arith.constant 0 : index
    %c0_7 = arith.constant 0 : index
    %18 = vector.load %arg7[%c0_6, %c0_7] : memref<8x1xf32, #tpu.memory_space<vmem>>, vector<8x1xf32>
    %19 = arith.subf %11, %14 : vector<8x1xf32>
    %20 = math.exp %19 : vector<8x1xf32>
    %21 = arith.mulf %18, %20 : vector<8x1xf32>
    %cst_8 = arith.constant dense<0.000000e+00> : vector<8xf32>
    %22 = vector.multi_reduction <add>, %17, %cst_8 [1] : vector<8x128xf32> to vector<8xf32>
    %23 = vector.shape_cast %22 : vector<8xf32> to vector<8x1xf32>
    %24 = arith.addf %21, %23 : vector<8x1xf32>
    %c0_9 = arith.constant 0 : index
    %c0_10 = arith.constant 0 : index
    %25 = vector.load %arg7[%c0_9, %c0_10] : memref<8x1xf32, #tpu.memory_space<vmem>>, vector<8x1xf32>
    tpu.vector_store %arg7[%c0_9, %c0_10], %24 {strides = array<i32>} : memref<8x1xf32, #tpu.memory_space<vmem>>, vector<8x1xf32>,
    %c0_11 = arith.constant 0 : index
    %c0_12 = arith.constant 0 : index
    %26 = vector.load %arg6[%c0_11, %c0_12] : memref<8x1xf32, #tpu.memory_space<vmem>>, vector<8x1xf32>
    tpu.vector_store %arg6[%c0_11, %c0_12], %14 {strides = array<i32>} : memref<8x1xf32, #tpu.memory_space<vmem>>, vector<8x1xf32>,
    %c0_13 = arith.constant 0 : index
    %c0_14 = arith.constant 0 : index
    %27 = vector.load %arg8[%c0_13, %c0_14] : memref<8x1xf32, #tpu.memory_space<vmem>>, vector<8x1xf32>
    %cst_15 = arith.constant 0.000000e+00 : f32
    %28 = vector.broadcast %cst_15 : f32 to vector<8x128xf32>
    %29 = arith.select %10, %3, %28 : vector<8x128xi1>, vector<8x128xf32>
    %cst_16 = arith.constant dense<0.000000e+00> : vector<8xf32>
    %30 = vector.multi_reduction <add>, %29, %cst_16 [1] : vector<8x128xf32> to vector<8xf32>
    %31 = vector.shape_cast %30 : vector<8xf32> to vector<8x1xf32>
    %32 = arith.addf %27, %31 : vector<8x1xf32>
    %c0_17 = arith.constant 0 : index
    %c0_18 = arith.constant 0 : index
    %33 = vector.load %arg8[%c0_17, %c0_18] : memref<8x1xf32, #tpu.memory_space<vmem>>, vector<8x1xf32>
    tpu.vector_store %arg8[%c0_17, %c0_18], %32 {strides = array<i32>} : memref<8x1xf32, #tpu.memory_space<vmem>>, vector<8x1xf32>,
    %c0_19 = arith.constant 0 : index
    %c0_20 = arith.constant 0 : index
    %34 = vector.load %arg9[%c0_19, %c0_20] : memref<8x1xf32, #tpu.memory_space<vmem>>, vector<8x1xf32>
    %cst_21 = arith.constant dense<0.000000e+00> : vector<8xf32>
    %35 = vector.multi_reduction <add>, %3, %cst_21 [1] : vector<8x128xf32> to vector<8xf32>
    %36 = vector.shape_cast %35 : vector<8xf32> to vector<8x1xf32>
    %37 = arith.addf %34, %36 : vector<8x1xf32>
    %c0_22 = arith.constant 0 : index
    %c0_23 = arith.constant 0 : index
    %38 = vector.load %arg9[%c0_22, %c0_23] : memref<8x1xf32, #tpu.memory_space<vmem>>, vector<8x1xf32>
    tpu.vector_store %arg9[%c0_22, %c0_23], %37 {strides = array<i32>} : memref<8x1xf32, #tpu.memory_space<vmem>>, vector<8x1xf32>,
    %c1_i32 = arith.constant 1 : i32
    %39 = arith.cmpi eq, %arg1, %c1_i32 : i32
    %40 = arith.extui %39 : i1 to i32
    %c0_i32_24 = arith.constant 0 : i32
    %41 = arith.cmpi ne, %40, %c0_i32_24 : i32
    scf.if %41 {
      %c0_25 = arith.constant 0 : index
      %c0_26 = arith.constant 0 : index
      %42 = memref.load %arg2[%c0_25, %c0_26] : memref<1x2xf32, #tpu.memory_space<smem>>
      %c0_27 = arith.constant 0 : index
      %c1 = arith.constant 1 : index
      %43 = memref.load %arg2[%c0_27, %c1] : memref<1x2xf32, #tpu.memory_space<smem>>
      %c0_28 = arith.constant 0 : index
      %c0_29 = arith.constant 0 : index
      %44 = vector.load %arg6[%c0_28, %c0_29] : memref<8x1xf32, #tpu.memory_space<vmem>>, vector<8x1xf32>
      %c0_30 = arith.constant 0 : index
      %c0_31 = arith.constant 0 : index
      %45 = vector.load %arg7[%c0_30, %c0_31] : memref<8x1xf32, #tpu.memory_space<vmem>>, vector<8x1xf32>
      %46 = math.log %45 : vector<8x1xf32>
      %47 = arith.addf %44, %46 : vector<8x1xf32>
      %c0_32 = arith.constant 0 : index
      %c0_33 = arith.constant 0 : index
      %48 = vector.load %arg8[%c0_32, %c0_33] : memref<8x1xf32, #tpu.memory_space<vmem>>, vector<8x1xf32>
      %49 = arith.subf %48, %47 : vector<8x1xf32>
      %c0_34 = arith.constant 0 : index
      %c0_35 = arith.constant 0 : index
      %50 = vector.load %arg9[%c0_34, %c0_35] : memref<8x1xf32, #tpu.memory_space<vmem>>, vector<8x1xf32>
      %cst_36 = arith.constant 2.560000e+02 : f32
      %51 = vector.broadcast %cst_36 : f32 to vector<8x1xf32>
      %52 = arith.mulf %51, %47 : vector<8x1xf32>
      %53 = arith.subf %50, %52 : vector<8x1xf32>
      %54 = vector.broadcast %42 : f32 to vector<8x1xf32>
      %55 = arith.mulf %54, %49 : vector<8x1xf32>
      %56 = vector.broadcast %43 : f32 to vector<8x1xf32>
      %57 = arith.mulf %56, %53 : vector<8x1xf32>
      %58 = arith.addf %55, %57 : vector<8x1xf32>
      %cst_37 = arith.constant 0.000000e+00 : f32
      %59 = vector.broadcast %cst_37 : f32 to vector<8x1xf32>
      %60 = arith.subf %59, %58 : vector<8x1xf32>
      %c8_i32 = arith.constant 8 : i32
      %61 = arith.muli %arg0, %c8_i32 : i32
      %62 = tpu.iota {dimensions = array<i32: 0>} : vector<8x1xi32>
      %63 = vector.broadcast %61 : i32 to vector<8x1xi32>
      %64 = arith.addi %63, %62 : vector<8x1xi32>
      %c32_i32 = arith.constant 32 : i32
      %65 = vector.broadcast %c32_i32 : i32 to vector<8x1xi32>
      %66 = arith.cmpi slt, %64, %65 : vector<8x1xi32>
      %cst_38 = arith.constant 0.000000e+00 : f32
      %67 = vector.broadcast %cst_38 : f32 to vector<8x1xf32>
      %68 = arith.select %66, %60, %67 : vector<8x1xi1>, vector<8x1xf32>
      %69 = vector.shape_cast %68 : vector<8x1xf32> to vector<1x8x1xf32>
      %cst_39 = arith.constant dense<0.000000e+00> : vector<1xf32>
      %70 = vector.multi_reduction <add>, %69, %cst_39 [1, 2] : vector<1x8x1xf32> to vector<1xf32>
      %71 = vector.shape_cast %70 : vector<1xf32> to vector<1x1x1xf32>
      %72 = vector.extract %71[0, 0, 0] : f32 from vector<1x1x1xf32>
      %73 = vector.broadcast %72 : f32 to vector<8x128xf32>
      %c0_40 = arith.constant 0 : index
      %c0_41 = arith.constant 0 : index
      %74 = vector.load %arg5[%c0_40, %c0_41] : memref<8x128xf32, #tpu.memory_space<vmem>>, vector<8x128xf32>
      tpu.vector_store %arg5[%c0_40, %c0_41], %73 {strides = array<i32>} : memref<8x128xf32, #tpu.memory_space<vmem>>, vector<8x128xf32>,
    } else {
    }
    return
  }
  func.func @transform_0(%arg0: i32, %arg1: i32) -> (i32, i32) {
    %c0_i32 = arith.constant 0 : i32
    %c0_i32_0 = arith.constant 0 : i32
    %c0_i32_1 = arith.constant 0 : i32
    return %c0_i32, %c0_i32_0 : i32, i32
  }
  func.func @transform_1(%arg0: i32, %arg1: i32) -> (i32, i32) {
    %c0_i32 = arith.constant 0 : i32
    return %arg0, %arg1 : i32, i32
  }
  func.func @transform_2(%arg0: i32, %arg1: i32) -> (i32, i32) {
    %c0_i32 = arith.constant 0 : i32
    %c0_i32_0 = arith.constant 0 : i32
    return %arg0, %c0_i32 : i32, i32
  }
  func.func @transform_3(%arg0: i32, %arg1: i32) -> (i32, i32) {
    %c0_i32 = arith.constant 0 : i32
    %c0_i32_0 = arith.constant 0 : i32
    return %arg0, %c0_i32 : i32, i32
  }
}

</mosaic_0001>

<llo_original>
// kernel: tpu_custom_call.1
$region0: #{tpu_custom_call.1}
  #allocation0 [shape = 'u32[]', space=smem, size = 0x4, offset = 0x4, fixed_abs, tag = 'smem constant byte address 0x4 - core index']
  #allocation1 [shape = 'u32[72,128]{1,0:T(1,128)}', space=vmem, size = 0x9000, scoped, tag = 'internal scratch']
  #allocation2 [shape = 'f32[8,1]{1,0:T(8,128)}', space=vmem, size = 0x1000, scoped, tag = 'scratch operand']
  #allocation3 [shape = 'f32[8,1]{1,0:T(8,128)}', space=vmem, size = 0x1000, scoped, tag = 'scratch operand']
  #allocation4 [shape = 'f32[8,1]{1,0:T(8,128)}', space=vmem, size = 0x1000, scoped, tag = 'scratch operand']
  #allocation5 [shape = 'f32[8,1]{1,0:T(8,128)}', space=vmem, size = 0x1000, scoped, tag = 'scratch operand']
  %s0 = inlined_call_operand.vmem [shape: f32[1,2], index: 0, kind: input, shape index: {}]
  %s1 = inlined_call_operand.hbm [shape: f32[32,256], index: 1, kind: input, shape index: {}]
  %s2 = inlined_call_operand.vmem [shape: s32[32,1], index: 2, kind: input, shape index: {}]
  %s3 = inlined_call_operand.hbm [shape: f32[32,128], index: 3, kind: output, shape index: {}]
  %s4 = sld [smem:[#allocation0]]
  $region61: #{tpu_custom_call.1} parent=0
    _
  %s6 = ssub.s32 1, %s4
  %s7 = scalar_select 0, %s6, %s4
  $region1: #{tpu_custom_call.1} parent=0
    #allocation6 [shape = 'u8[512]{0}', space=smem, size = 0x200, scoped, tag = 'input window, operand 0, single buffered']
    #allocation7 [shape = 's32[2]{0}', space=sflag, size = 0x8, scoped, tag = 'scoped memory for tpu_custom_call.1']
    #allocation8 [shape = 's32[2]{0}', space=sflag, size = 0x8, scoped, tag = 'scoped memory for tpu_custom_call.1']
    #allocation9 [shape = 's32[2]{0}', space=sflag, size = 0x8, scoped, tag = 'scoped memory for tpu_custom_call.1']
    #allocation10 [shape = 'u8[8192]{0}', space=vmem, size = 0x2000, scoped, tag = 'input window, operand 1']
    #allocation11 [shape = 'u8[8192]{0}', space=vmem, size = 0x2000, scoped, tag = 'output window, operand 0']
    %8 = vsyncpa [#allocation9], 0
    %9 = vsyncpa [#allocation7], 0
    %s10 = scalar_lea.sflag [#allocation7], 1
    %11 = vsyncpa %s10, 0
    %12 = vsyncpa [#allocation8], 0
    %s13 = scalar_lea.sflag [#allocation8], 1
    %14 = vsyncpa %s13, 0
    loop: start=0, step=1, limit=10
    $region2: #{tpu_custom_call.1} parent=1 // loop_pre_header
      _
    $region3: #{tpu_custom_call.1} parent=1 // loop_header
      %s16 = sphi 0, %s20
      %p17 = scmp.ge.s32.totalorder %s16, 10
      %s23 = sphi 0, %s35
      %s24 = sphi 0, %s31
      %s25 = sphi 0, %s23
      %s26 = sphi 0, %s24
      %s27 = sphi 0, %s25
      %s28 = sphi 0, %s26
      %s36 = sphi 0, %s36
      %s38 = sphi 0, %s36
      %s39 = sphi 0, %s38
      %s53 = sphi 0, %s39
      %s61 = sphi 0, %s63
      %s64 = sphi 0, %s61
      %s65 = sphi 0, %s64
      %s81 = sphi 0, %s65
      %s87 = sphi 0, %s89
      %s90 = sphi 0, %s87
      %s91 = sphi 0, %s90
      %s107 = sphi 0, %s91
      %s113 = sphi 0, %s115
      %s116 = sphi 0, %s113
      %s117 = sphi 0, %s116
      %s133 = sphi 0, %s117
    $region4: #{tpu_custom_call.1} parent=1 // loop_header_branch
      %19 = sbr.rel (%p17) target = $region8
    $region5: #{tpu_custom_call.1} parent=1 // loop_body
      %s21 = ssub.s32 %s16, 1
      %s22 = ssub.s32 %s16, 2
      %s29 = sadd.s32 1, %s24
      %p30 = scmp.ge.s32.totalorder %s29, 2
      %s31 = scalar_select %p30, 0, %s29
      %s32 = sadd.s32 1, %s23
      %s33 = scalar_select %p30, %s32, %s23
      %p34 = scmp.ge.s32.totalorder %s33, 4
      %s35 = scalar_select %p34, 0, %s33
      %s37 = sadd.s32 %s36, 1
      %p40 = scmp.eq.s32.totalorder %s16, 7
      %p41 = scmp.ne.s32.totalorder %s36, %s38
      %p42 = scmp.eq.s32.totalorder %s16, 0
      %p43 = por %p41, %p42
      %p44 = scmp.ne.s32.totalorder %s36, %s38
      %p45 = scmp.eq.s32.totalorder %s21, 7
      %p46 = por %p44, %p45
      %p47 = scmp.ne.s32.totalorder %s38, %s39
      %p48 = scmp.eq.s32.totalorder %s21, 0
      %p49 = por %p47, %p48
      %p50 = scmp.ne.s32.totalorder %s38, %s39
      %p51 = scmp.eq.s32.totalorder %s22, 7
      %p52 = por %p50, %p51
      %p54 = scmp.ne.s32.totalorder %s39, %s53
      %p55 = scmp.eq.s32.totalorder %s22, 0
      %p56 = por %p54, %p55
      %s57 = ssub.s32 %s23, %s35
      %s58 = ssub.s32 %s24, %s31
      %s59 = sor.u32 %s57, %s58
      %p60 = scmp.eq.s32.totalorder %s59, 0
      %s62 = sadd.s32 %s61, 1
      %s63 = scalar_select %p60, %s61, %s62
      %p66 = pneg %p60
      %p67 = scmp.eq.s32.totalorder %s16, 7
      %p68 = por %p66, %p67
      %p69 = scmp.ne.s32.totalorder %s61, %s64
      %p70 = scmp.eq.s32.totalorder %s16, 0
      %p71 = por %p69, %p70
      %p72 = scmp.ne.s32.totalorder %s61, %s64
      %p73 = scmp.eq.s32.totalorder %s21, 7
      %p74 = por %p72, %p73
      %p75 = scmp.ne.s32.totalorder %s64, %s65
      %p76 = scmp.eq.s32.totalorder %s21, 0
      %p77 = por %p75, %p76
      %p78 = scmp.ne.s32.totalorder %s64, %s65
      %p79 = scmp.eq.s32.totalorder %s22, 7
      %p80 = por %p78, %p79
      %p82 = scmp.ne.s32.totalorder %s65, %s81
      %p83 = scmp.eq.s32.totalorder %s22, 0
      %p84 = por %p82, %p83
      %s85 = ssub.s32 %s23, %s35
      %p86 = scmp.eq.s32.totalorder %s85, 0
      %s88 = sadd.s32 %s87, 1
      %s89 = scalar_select %p86, %s87, %s88
      %p92 = pneg %p86
      %p93 = scmp.eq.s32.totalorder %s16, 7
      %p94 = por %p92, %p93
      %p95 = scmp.ne.s32.totalorder %s87, %s90
      %p96 = scmp.eq.s32.totalorder %s16, 0
      %p97 = por %p95, %p96
      %p98 = scmp.ne.s32.totalorder %s87, %s90
      %p99 = scmp.eq.s32.totalorder %s21, 7
      %p100 = por %p98, %p99
      %p101 = scmp.ne.s32.totalorder %s90, %s91
      %p102 = scmp.eq.s32.totalorder %s21, 0
      %p103 = por %p101, %p102
      %p104 = scmp.ne.s32.totalorder %s90, %s91
      %p105 = scmp.eq.s32.totalorder %s22, 7
      %p106 = por %p104, %p105
      %p108 = scmp.ne.s32.totalorder %s91, %s107
      %p109 = scmp.eq.s32.totalorder %s22, 0
      %p110 = por %p108, %p109
      %s111 = ssub.s32 %s23, %s35
      %p112 = scmp.eq.s32.totalorder %s111, 0
      %s114 = sadd.s32 %s113, 1
      %s115 = scalar_select %p112, %s113, %s114
      %p118 = pneg %p112
      %p119 = scmp.eq.s32.totalorder %s16, 7
      %p120 = por %p118, %p119
      %p121 = scmp.ne.s32.totalorder %s113, %s116
      %p122 = scmp.eq.s32.totalorder %s16, 0
      %p123 = por %p121, %p122
      %p124 = scmp.ne.s32.totalorder %s113, %s116
      %p125 = scmp.eq.s32.totalorder %s21, 7
      %p126 = por %p124, %p125
      %p127 = scmp.ne.s32.totalorder %s116, %s117
      %p128 = scmp.eq.s32.totalorder %s21, 0
      %p129 = por %p127, %p128
      %p130 = scmp.ne.s32.totalorder %s116, %s117
      %p131 = scmp.eq.s32.totalorder %s22, 7
      %p132 = por %p130, %p131
      %p134 = scmp.ne.s32.totalorder %s117, %s133
      %p135 = scmp.eq.s32.totalorder %s22, 0
      %p136 = por %p134, %p135
      %p137 = scmp.le.s32.totalorder 1, %s16
      %p138 = scmp.lt.s32.totalorder %s16, 9
      %p139 = pnand %p137, %p138
      %p140 = pneg %p139
      // Predicated region
      $region9: #{tpu_custom_call.1} parent=5 // pred_check
        _
      $region10: #{tpu_custom_call.1} parent=5 // pred_check_branch
        %142 = sbr.rel (%p139) target = $region12
      $region11: #{tpu_custom_call.1} parent=5 // pred_region
        %s143 = ssub.s32 %s16, 1
        // Predicated region
        $region13: #{tpu_custom_call.1} parent=11 // pred_check
          %p144 = pneg %p49
        $region14: #{tpu_custom_call.1} parent=11 // pred_check_branch
          %146 = sbr.rel (%p144) target = $region16
        $region15: #{tpu_custom_call.1} parent=11 // pred_region
          %148 = vsyncadd [#allocation9], 0
          %s150 = sshll.u32 %s0, 4
          %s151 = int_to_ptr.vmem [resolvable:$true] %s150
          %153 = dma.vmem_to_smem %s151, 16, [#allocation6], [#allocation9]
        $region16: #{tpu_custom_call.1} parent=11 // pred_fallthru
          _
      $region12: #{tpu_custom_call.1} parent=5 // pred_fallthru
        _
      %p154 = scmp.lt.s32.totalorder %s16, 8
      // Predicated region
      $region17: #{tpu_custom_call.1} parent=5 // pred_check
        %p155 = pneg %p154
      $region18: #{tpu_custom_call.1} parent=5 // pred_check_branch
        %157 = sbr.rel (%p155) target = $region20
      $region19: #{tpu_custom_call.1} parent=5 // pred_region
        // Predicated region
        $region21: #{tpu_custom_call.1} parent=19 // pred_check
          %p158 = pneg %p71
        $region22: #{tpu_custom_call.1} parent=19 // pred_check_branch
          %160 = sbr.rel (%p158) target = $region24
        $region23: #{tpu_custom_call.1} parent=19 // pred_region
          %s161 = sand.u32 %s61, 1
          %s162 = scalar_lea.sflag [#allocation7], %s161
          %s163 = sand.u32 %s61, 1
          %s164 = smul.addr %s163, 8
          %s165 = scalar_lea.vmem [#allocation10], %s164
          %167 = vsyncadd %s162, 0
          %s168 = smul.addr %s23, 2
          %s169 = sadd.s32 %s24, %s168
          %s170 = smul.addr %s169, 8
          %s171 = scalar_lea.hbm %s1, %s170
          %s173 = sshll.u32 %s171, 4
          %s174 = int_to_ptr.hbm [resolvable:$true] %s173
          %s175 = sshll.u32 %s165, 4
          %s176 = int_to_ptr.vmem [resolvable:$true] %s175
          %178 = dma.hbm_to_vmem [thread:$0]  %s174, 128, %s176, %s162
        $region24: #{tpu_custom_call.1} parent=19 // pred_fallthru
          _
        // Predicated region
        $region25: #{tpu_custom_call.1} parent=19 // pred_check
          %p179 = pneg %p97
        $region26: #{tpu_custom_call.1} parent=19 // pred_check_branch
          %181 = sbr.rel (%p179) target = $region28
        $region27: #{tpu_custom_call.1} parent=19 // pred_region
          %p182 = scmp.lt.s32.totalorder %s23, 3
          %s183 = scalar_select %p182, %s23, 3
          %s184 = smul.addr %s183, 8
          %s185 = scalar_lea.vmem %s2, %s184
        $region28: #{tpu_custom_call.1} parent=19 // pred_fallthru
          _
      $region20: #{tpu_custom_call.1} parent=5 // pred_fallthru
        _
      %p186 = scmp.le.s32.totalorder 1, %s16
      %p187 = scmp.lt.s32.totalorder %s16, 9
      %p188 = pnand %p186, %p187
      %p189 = pneg %p188
      // Predicated region
      $region29: #{tpu_custom_call.1} parent=5 // pred_check
        _
      $region30: #{tpu_custom_call.1} parent=5 // pred_check_branch
        %191 = sbr.rel (%p188) target = $region32
      $region31: #{tpu_custom_call.1} parent=5 // pred_region
        %s192 = ssub.s32 %s16, 1
        // Predicated region
        $region33: #{tpu_custom_call.1} parent=31 // pred_check
          %p193 = pneg %p49
        $region34: #{tpu_custom_call.1} parent=31 // pred_check_branch
          %195 = sbr.rel (%p193) target = $region36
        $region35: #{tpu_custom_call.1} parent=31 // pred_region
          %197 = dma.done [#allocation9], 16
        $region36: #{tpu_custom_call.1} parent=31 // pred_fallthru
          _
        %s198 = sand.u32 %s64, 1
        %s199 = scalar_lea.sflag [#allocation7], %s198
        %s200 = sand.u32 %s64, 1
        %s201 = smul.addr %s200, 8
        %s202 = scalar_lea.vmem [#allocation10], %s201
        // Predicated region
        $region37: #{tpu_custom_call.1} parent=31 // pred_check
          %p203 = pneg %p77
        $region38: #{tpu_custom_call.1} parent=31 // pred_check_branch
          %205 = sbr.rel (%p203) target = $region40
        $region39: #{tpu_custom_call.1} parent=31 // pred_region
          %207 = dma.done %s199, 128
        $region40: #{tpu_custom_call.1} parent=31 // pred_fallthru
          _
        %208 = sfence
        %p209 = pneg %p49
        %p210 = pneg %p46
        %s211 = sand.u32 %s64, 1
        %s212 = scalar_lea.sflag [#allocation7], %s211
        %s213 = sand.u32 %s64, 1
        %s214 = smul.addr %s213, 8
        %s215 = scalar_lea.vmem [#allocation10], %s214
        %p216 = pneg %p77
        %p217 = pneg %p74
        %p218 = scmp.lt.s32.totalorder %s25, 3
        %s219 = scalar_select %p218, %s25, 3
        %s220 = smul.addr %s219, 8
        %s221 = scalar_lea.vmem %s2, %s220
        %p222 = pneg %p103
        %p223 = pneg %p100
        %p224 = pneg %p129
        %p225 = pneg %p126
        %s226 = sand.u32 %s116, 1
        %s227 = scalar_lea.sflag [#allocation8], %s226
        %s228 = sand.u32 %s116, 1
        %s229 = smul.addr %s228, 8
        %s230 = scalar_lea.vmem [#allocation11], %s229
        %p231 = scmp.lt.s32.totalorder %s25, 3
        %s232 = scalar_select %p231, %s25, 3
        %s233 = smul.addr %s232, 8
        %s234 = scalar_lea.vmem %s2, %s233
        %p235 = scmp.eq.s32.totalorder %s26, 0
        // Predicated region
        $region41: #{tpu_custom_call.1} parent=31 // pred_check
          %p236 = pneg %p235
        $region42: #{tpu_custom_call.1} parent=31 // pred_check_branch
          %238 = sbr.rel (%p236) target = $region44
        $region43: #{tpu_custom_call.1} parent=31 // pred_region
          %vm239 = vcmask 7168
          %240 = vst.msk [vmem:[#allocation2] sm:$0xff] %vm239, -inf
          %241 = vst.msk [vmem:[#allocation3] sm:$0xff] %vm239, 0.0
          %242 = vst.msk [vmem:[#allocation4] sm:$0xff] %vm239, 0.0
          %243 = vst.msk [vmem:[#allocation5] sm:$0xff] %vm239, 0.0
        $region44: #{tpu_custom_call.1} parent=31 // pred_fallthru
          _
        %v244 = vld [vmem:[%s202] sm:$0xff]
        %v245 = vlaneseq
        %v246 = vand.u32 %v245, 127
        %v247 = vld [vmem:[%s234] sm:$0xff]
        %s248 = smul.u32 %s26, 128
        %v249 = vstv %s248
        %v250 = vsub.s32 %v247, %v249
        %251 = vset.pattern.permute.xlu0 0
        %252 = vperm.xlu0 %251, %v250
        %v253 = vpop.permute.xlu0 %252
        %vm254 = vcmp.eq.s32.totalorder %v246, %v253
        %v255 = vld [vmem:[#allocation2] sm:$0xff]
        %256 = vmax.xlane.f32.xlu0 %v244
        %v257 = vpop.xlane.xlu0 %256
        %v258 = vmax.f32 %v255, %v257
        %260 = vset.pattern.permute.xlu0 0
        %261 = vperm.xlu0 %260, %v258
        %v262 = vpop.permute.xlu0 %261
        %v264 = vsub.f32 %v244, %v262
        %v265 = vmul.f32 %v264, 1.442695
        %v266 = vpow.pop %v265
        %v267 = vld [vmem:[#allocation3] sm:$0xff]
        %v268 = vsub.f32 %v255, %v258
        %v269 = vmul.f32 %v268, 1.442695
        %v270 = vpow.pop %v269
        %v271 = vmul.f32 %v267, %v270
        %272 = vadd.xlane.f32.xlu0 %v266
        %v273 = vpop.xlane.xlu0 %272
        %v274 = vadd.f32 %v271, %v273
        %vm275 = vcmask 7168
        %276 = vst.msk [vmem:[#allocation3] sm:$0xff] %vm275, %v274
        %277 = vst.msk [vmem:[#allocation2] sm:$0xff] %vm275, %v258
        %v278 = vld [vmem:[#allocation4] sm:$0xff]
        %v279 = vsel %vm254, %v244, 0.0
        %280 = vadd.xlane.f32.xlu0 %v279
        %v281 = vpop.xlane.xlu0 %280
        %v282 = vadd.f32 %v278, %v281
        %283 = vst.msk [vmem:[#allocation4] sm:$0xff] %vm275, %v282
        %v284 = vld [vmem:[#allocation5] sm:$0xff]
        %285 = vadd.xlane.f32.xlu0 %v244
        %v286 = vpop.xlane.xlu0 %285
        %v287 = vadd.f32 %v284, %v286
        %288 = vst.msk [vmem:[#allocation5] sm:$0xff] %vm275, %v287
        %p289 = scmp.eq.s32.totalorder %s26, 1
        // Predicated region
        $region45: #{tpu_custom_call.1} parent=31 // pred_check
          %p290 = pneg %p289
        $region46: #{tpu_custom_call.1} parent=31 // pred_check_branch
          %292 = sbr.rel (%p290) target = $region48
        $region47: #{tpu_custom_call.1} parent=31 // pred_region
          %s293 = sld [smem:[#allocation6]]
          %s294 = sld [smem:[#allocation6 + $0x1]]
          %v295 = vld [vmem:[#allocation2] sm:$0xff]
          %v296 = vld [vmem:[#allocation3] sm:$0xff]
          %v297 = vlog2.pop %v296
          %v298 = vmul.f32 %v297, 0.6931472
          %v299 = vadd.f32 %v295, %v298
          %v300 = vld [vmem:[#allocation4] sm:$0xff]
          %v301 = vsub.f32 %v300, %v299
          %v302 = vld [vmem:[#allocation5] sm:$0xff]
          %v303 = vmul.f32 %v299, 256.0
          %v304 = vsub.f32 %v302, %v303
          %v305 = vstv %s293
          %v306 = vmul.f32 %v305, %v301
          %v307 = vstv %s294
          %v308 = vmul.f32 %v307, %v304
          %v309 = vadd.f32 %v306, %v308
          %v310 = vsub.f32 0.0, %v309
          %s311 = smul.u32 %s25, 8
          %v312 = vlaneseq
          %v313 = vshrl.u32 %v312, 7
          %v314 = vstv %s311
          %v315 = vadd.s32 %v314, %v313
          %vm316 = vcmp.lt.s32.totalorder %v315, 32
          %v317 = vsel %vm316, %v310, 0.0
          %v318 = vsel %vm275, %v317, 0.0
          %319 = vadd.xlane.f32.xlu0 %v318
          %v320 = vpop.xlane.xlu0 %319
          %v321 = vrot.slane %v320, 4
          %v322 = vadd.f32 %v320, %v321
          %v323 = vrot.slane %v322, 2
          %v324 = vadd.f32 %v322, %v323
          %v325 = vrot.slane %v324, 1
          %v326 = vadd.f32 %v324, %v325
          %s327 = vtos %v326
          %v328 = vstv %s327
          %329 = vst [vmem:[%s230] sm:$0xff] %v328
        $region48: #{tpu_custom_call.1} parent=31 // pred_fallthru
          _
        %s330 = sand.u32 %s116, 1
        %s331 = scalar_lea.sflag [#allocation8], %s330
        %s332 = sand.u32 %s116, 1
        %s333 = smul.addr %s332, 8
        %s334 = scalar_lea.vmem [#allocation11], %s333
        // Predicated region
        $region49: #{tpu_custom_call.1} parent=31 // pred_check
          %p335 = pneg %p126
        $region50: #{tpu_custom_call.1} parent=31 // pred_check_branch
          %337 = sbr.rel (%p335) target = $region52
        $region51: #{tpu_custom_call.1} parent=31 // pred_region
          %339 = vsyncadd %s331, 0
          %s340 = smul.addr %s25, 8
          %s341 = scalar_lea.hbm %s3, %s340
          %s343 = sshll.u32 %s334, 4
          %s344 = int_to_ptr.vmem [resolvable:$true] %s343
          %s345 = sshll.u32 %s341, 4
          %s346 = int_to_ptr.hbm [resolvable:$true] %s345
          %348 = dma.vmem_to_hbm [thread:$0]  %s344, 128, %s346, %s331
        $region52: #{tpu_custom_call.1} parent=31 // pred_fallthru
          _
      $region32: #{tpu_custom_call.1} parent=5 // pred_fallthru
        _
      %p349 = scmp.le.s32.totalorder 2, %s16
      // Predicated region
      $region53: #{tpu_custom_call.1} parent=5 // pred_check
        %p350 = pneg %p349
      $region54: #{tpu_custom_call.1} parent=5 // pred_check_branch
        %352 = sbr.rel (%p350) target = $region56
      $region55: #{tpu_custom_call.1} parent=5 // pred_region
        %s353 = ssub.s32 %s16, 2
        // Predicated region
        $region57: #{tpu_custom_call.1} parent=55 // pred_check
          %p354 = pneg %p132
        $region58: #{tpu_custom_call.1} parent=55 // pred_check_branch
          %356 = sbr.rel (%p354) target = $region60
        $region59: #{tpu_custom_call.1} parent=55 // pred_region
          %s357 = sand.u32 %s117, 1
          %s358 = scalar_lea.sflag [#allocation8], %s357
          %s359 = sand.u32 %s117, 1
          %s360 = smul.addr %s359, 8
          %s361 = scalar_lea.vmem [#allocation11], %s360
          %363 = dma.done %s358, 128
        $region60: #{tpu_custom_call.1} parent=55 // pred_fallthru
          _
      $region56: #{tpu_custom_call.1} parent=5 // pred_fallthru
        _
    $region6: #{tpu_custom_call.1} parent=1 // loop_footer
      %s20 = sadd.s32 1, %s16
    $region7: #{tpu_custom_call.1} parent=1 // loop_footer_branch
      %15 = sbr.rel target = $region3
    $region8: #{tpu_custom_call.1} parent=1 // loop_exit
      _
    %364 = vsyncpa [#allocation7], 1
    %s365 = scalar_lea.sflag [#allocation7], 1
    %366 = vsyncpa %s365, 1
    %367 = vsyncpa [#allocation8], 1
    %s368 = scalar_lea.sflag [#allocation8], 1
    %369 = vsyncpa %s368, 1
    %370 = vsyncpa [#allocation9], 1
    %s371 = scalar_lea.sflag [#allocation9], 1
    %372 = vsyncpa %s371, 1

</llo_original>
